<compile_context>
chip_gen: v7x
topology: tpu7x:2x2x1
jax: 0.10.0
libtpu: 0.0.40
codegen_flags: <defaults>
</compile_context>

<pallas_src>
import jax
import jax.numpy as jnp
from jax.experimental import pallas as pl
from jax.experimental.pallas import tpu as pltpu


# --------------------------------------------------------------------------- #
# Kernels
# --------------------------------------------------------------------------- #
def _ffn_resident_kernel(x_ref, w1_ref, b1_ref, w2_ref, b2_ref, o_ref):
    """Whole FFN for one row tile; W1/W2 are VMEM-resident.

    grid = (M/tm,).  The weight index_maps are constant, so W1/W2 are DMA'd
    from HBM once and reused for every row tile (no per-row-tile re-stream),
    and there is no accumulator round trip.
    """
    h = jnp.dot(x_ref[...], w1_ref[...], preferred_element_type=jnp.float32)
    h = jnp.maximum(h + b1_ref[...], 0.0)                 # bias + ReLU in f32
    # TODO(synk): nn.Dropout between relu and w_2 is eval-mode identity; omitted.
    y = jnp.dot(h.astype(w2_ref.dtype), w2_ref[...],
                preferred_element_type=jnp.float32)
    o_ref[...] = (y + b2_ref[...]).astype(o_ref.dtype)


def _ffn_streamed_kernel(x_ref, w1_ref, b1_ref, w2_ref, b2_ref, o_ref, acc_ref):
    """FFN with the hidden (d_ff) axis as the trailing reduction grid axis.

    grid = (M/tm, Dff/tf).  Each step produces a (tm, tf) ReLU slice of the
    hidden activation in VMEM/vregs and immediately contracts it with the
    matching (tf, D) slice of W2 into a resident f32 accumulator — the d_ff
    wide intermediate never touches HBM.
    """
    f = pl.program_id(1)

    @pl.when(f == 0)
    def _init():
        # Fold the second bias into the accumulator init (no extra output pass).
        acc_ref[...] = jnp.broadcast_to(b2_ref[...], acc_ref.shape)

    h = jnp.dot(x_ref[...], w1_ref[...], preferred_element_type=jnp.float32)
    h = jnp.maximum(h + b1_ref[...], 0.0)
    acc_ref[...] += jnp.dot(h.astype(w2_ref.dtype), w2_ref[...],
                            preferred_element_type=jnp.float32)

    @pl.when(f == pl.num_programs(1) - 1)
    def _finalize():
        o_ref[...] = acc_ref[...].astype(o_ref.dtype)


# --------------------------------------------------------------------------- #
# VMEM-budget-aware tile selection
# --------------------------------------------------------------------------- #
def _round_up(n, m):
    return ((n + m - 1) // m) * m


def _vmem_capacity_bytes():
    try:
        return int(pltpu.get_tpu_info().vmem_capacity_bytes)
    except Exception:
        return 64 * 1024 * 1024          # conservative: v7x per-TensorCore VMEM


_TM_CANDIDATES = (2048, 1024, 512, 256, 128, 64, 32, 16, 8)
_TF_CANDIDATES = (512, 256, 128)         # multiples of 256 preferred (v6e/v7x MXU)


def _resident_bytes(tm, D, Dff, wb, ob):
    """VMEM working set of the weight-resident kernel (double-buffer counted)."""
    return (2 * tm * D * wb              # x tile
            + 2 * D * Dff * wb           # W1 (full)
            + 2 * Dff * D * wb           # W2 (full)
            + 2 * 8 * Dff * 4            # b1 (sublane-padded, f32)
            + 2 * 8 * D * 4              # b2
            + 2 * tm * D * ob            # out tile
            + tm * Dff * 4)              # f32 hidden intermediate


def _streamed_bytes(tm, tf, D, wb, ob):
    """VMEM working set of the d_ff-streamed kernel."""
    return (2 * tm * D * wb              # x tile
            + 2 * D * tf * wb            # W1 column block
            + 2 * tf * D * wb            # W2 row block
            + 2 * 8 * tf * 4             # b1 block
            + 2 * 8 * D * 4              # b2
            + 2 * tm * D * ob            # out tile
            + tm * D * 4                 # f32 accumulator scratch
            + tm * tf * 4)               # f32 hidden intermediate


def _enforce_two_row_tiles(M, tm):
    # v7x megacore: the "parallel" row axis shards across 2 TensorCores, so
    # make sure there are at least 2 row tiles whenever possible.
    while _round_up(max(M, 1), tm) // tm < 2 and tm > 8:
        tm //= 2
    return tm


def _choose_resident_tm(M, D, Dff, wb, ob, budget):
    m8 = max(8, _round_up(M, 8))
    cands = [c for c in _TM_CANDIDATES if c <= m8]
    tm = cands[-1]
    for c in cands:                                  # largest tm that fits
        if _resident_bytes(c, D, Dff, wb, ob) <= budget:
            tm = c
            break
    return _enforce_two_row_tiles(M, tm)


def _choose_streamed_tiles(M, D, Dff_pad, wb, ob, budget):
    m8 = max(8, _round_up(M, 8))
    tm_cands = [c for c in _TM_CANDIDATES if c <= m8]
    tf_cands = [c for c in _TF_CANDIDATES if Dff_pad % c == 0] or [128]
    tm, tf = tm_cands[-1], tf_cands[-1]
    # Weight HBM re-stream scales as M/tm: prioritize the largest tm the budget
    # allows, then the largest hidden tile (MXU fill) at that tm.
    done = False
    for tmc in tm_cands:
        for tfc in tf_cands:
            if _streamed_bytes(tmc, tfc, D, wb, ob) <= budget:
                tm, tf, done = tmc, tfc, True
                break
        if done:
            break
    return _enforce_two_row_tiles(M, tm), tf


# --------------------------------------------------------------------------- #
# Public wrapper
# --------------------------------------------------------------------------- #
def positionwise_feed_forward(x, w1, b1, w2, b2, *,
                              compute_dtype=None,
                              weights_resident=None,
                              tm=None, tf=None):
    """Fused position-wise FFN:  y = relu(x @ W1 + b1) @ W2 + b2.

    compute_dtype: dtype fed to the MXU (x / weights / hidden). Defaults to
        x.dtype (faithful to the f32 torch module); jnp.bfloat16 is the
        recommended production setting (full-rate MXU, half the DMA bytes).
        Bias / ReLU / accumulation always stay f32.
    weights_resident: None = auto (resident when both weights fit the VMEM
        budget), or force with True/False.
    """
    orig_shape = x.shape
    D = orig_shape[-1]
    Dff = w1.shape[1]
    M = 1
    for s in orig_shape[:-1]:
        M *= s

    out_dtype = x.dtype
    cdt = jnp.dtype(compute_dtype) if compute_dtype is not None else jnp.dtype(out_dtype)
    wb = cdt.itemsize
    ob = jnp.dtype(out_dtype).itemsize

    # VMEM budget per generation (v5e/v6e 128 MiB, v7x 64 MiB per TC).
    phys = _vmem_capacity_bytes()
    vmem_limit = min(int(phys * 0.70), 128 * 1024 * 1024)
    tile_budget = int(vmem_limit * 0.90)     # headroom for compiler scratch

    x2 = x.reshape(M, D).astype(cdt)
    w1c = w1.astype(cdt)
    w2c = w2.astype(cdt)
    b1f = b1.astype(jnp.float32).reshape(1, Dff)
    b2f = b2.astype(jnp.float32).reshape(1, D)

    m8 = max(8, _round_up(M, 8))
    if weights_resident is None:
        probe_tm = min(256, m8)
        use_resident = _resident_bytes(probe_tm, D, Dff, wb, ob) <= tile_budget
    else:
        use_resident = bool(weights_resident)

    if use_resident:
        if tm is None:
            tm = _choose_resident_tm(M, D, Dff, wb, ob, tile_budget)
        M_pad = _round_up(max(M, 1), tm)
        if M_pad != M:
            x2 = jnp.pad(x2, ((0, M_pad - M), (0, 0)))

        out = pl.pallas_call(
            _ffn_resident_kernel,
            out_shape=jax.ShapeDtypeStruct((M_pad, D), out_dtype),
            grid_spec=pltpu.PrefetchScalarGridSpec(
                num_scalar_prefetch=0,
                grid=(M_pad // tm,),
                in_specs=[
                    pl.BlockSpec((tm, D), lambda i: (i, 0)),    # x row tile
                    pl.BlockSpec((D, Dff), lambda i: (0, 0)),   # W1 (resident)
                    pl.BlockSpec((1, Dff), lambda i: (0, 0)),   # b1
                    pl.BlockSpec((Dff, D), lambda i: (0, 0)),   # W2 (resident)
                    pl.BlockSpec((1, D), lambda i: (0, 0)),     # b2
                ],
                out_specs=pl.BlockSpec((tm, D), lambda i: (i, 0)),
            ),
            compiler_params=pltpu.CompilerParams(
                dimension_semantics=("parallel",),
                vmem_limit_bytes=vmem_limit),
        )(x2, w1c, b1f, w2c, b2f)
    else:
        # Zero-pad the hidden dim to a lane multiple (zero W1 columns / zero W2
        # rows / zero b1 contribute exactly nothing to the output).
        Dff_pad = _round_up(Dff, 128)
        auto_tm, auto_tf = _choose_streamed_tiles(M, D, Dff_pad, wb, ob, tile_budget)
        if tm is None:
            tm = auto_tm
        if tf is None:
            tf = auto_tf
        M_pad = _round_up(max(M, 1), tm)
        if M_pad != M:
            x2 = jnp.pad(x2, ((0, M_pad - M), (0, 0)))
        if Dff_pad != Dff:
            w1c = jnp.pad(w1c, ((0, 0), (0, Dff_pad - Dff)))
            b1f = jnp.pad(b1f, ((0, 0), (0, Dff_pad - Dff)))
            w2c = jnp.pad(w2c, ((0, Dff_pad - Dff), (0, 0)))

        # NOTE: on v5e (lowest HBM BW) deeper weight buffering
        # (pipeline_mode=pl.Buffered(3)) is a further knob once vmem_limit allows.
        out = pl.pallas_call(
            _ffn_streamed_kernel,
            out_shape=jax.ShapeDtypeStruct((M_pad, D), out_dtype),
            grid_spec=pltpu.PrefetchScalarGridSpec(
                num_scalar_prefetch=0,
                grid=(M_pad // tm, Dff_pad // tf),
                in_specs=[
                    pl.BlockSpec((tm, D), lambda i, f: (i, 0)),   # x row tile
                    pl.BlockSpec((D, tf), lambda i, f: (0, f)),   # W1 column block
                    pl.BlockSpec((1, tf), lambda i, f: (0, f)),   # b1 block
                    pl.BlockSpec((tf, D), lambda i, f: (f, 0)),   # W2 row block
                    pl.BlockSpec((1, D), lambda i, f: (0, 0)),    # b2
                ],
                out_specs=pl.BlockSpec((tm, D), lambda i, f: (i, 0)),
                scratch_shapes=[pltpu.VMEM((tm, D), jnp.float32)],
            ),
            compiler_params=pltpu.CompilerParams(
                dimension_semantics=("parallel", "arbitrary"),
                vmem_limit_bytes=vmem_limit),
        )(x2, w1c, b1f, w2c, b2f)

    if out.shape[0] != M:
        out = out[:M]
    return out.reshape(orig_shape)


# --------------------------------------------------------------------------- #
# Self-test
# --------------------------------------------------------------------------- #
if __name__ == "__main__":
    # Small but representative shapes; odd seq length exercises row padding
    # (M = 14 -> padded to 16), Dff = 384 exercises a real 3-step reduction
    # on the streamed path.
    B, T, D, Dff = 2, 7, 128, 384

    key = jax.random.PRNGKey(0)
    kx, k1, kb1, k2, kb2 = jax.random.split(key, 5)
    x = jax.random.normal(kx, (B, T, D), jnp.float32)
    # Weights stored (in, out) == torch nn.Linear weight transposed.
    w1 = jax.random.normal(k1, (D, Dff), jnp.float32) * 0.05
    b1 = jax.random.normal(kb1, (Dff,), jnp.float32) * 0.01
    w2 = jax.random.normal(k2, (Dff, D), jnp.float32) * 0.05
    b2 = jax.random.normal(kb2, (D,), jnp.float32) * 0.01

    with jax.default_matmul_precision("float32"):
        ref = jnp.maximum(x @ w1 + b1, 0.0) @ w2 + b2

    # 1) Auto path (weight-resident, f32 compute) — matches torch f32 numerics.
    out_res = jax.block_until_ready(positionwise_feed_forward(x, w1, b1, w2, b2))
    assert out_res.shape == x.shape and out_res.dtype == x.dtype
    assert jnp.allclose(out_res, ref, rtol=2e-3, atol=2e-3), \
        float(jnp.max(jnp.abs(out_res - ref)))

    # 2) Forced streamed path (d_ff reduction grid axis + f32 accumulator).
    out_str = jax.block_until_ready(
        positionwise_feed_forward(x, w1, b1, w2, b2, weights_resident=False))
    assert jnp.allclose(out_str, ref, rtol=2e-3, atol=2e-3), \
        float(jnp.max(jnp.abs(out_str - ref)))

    # 3) bf16 MXU inputs with f32 accumulation (recommended production setting).
    out_bf = jax.block_until_ready(
        positionwise_feed_forward(x, w1, b1, w2, b2, compute_dtype=jnp.bfloat16))
    assert out_bf.dtype == x.dtype
    assert jnp.allclose(out_bf, ref, rtol=5e-2, atol=5e-2), \
        float(jnp.max(jnp.abs(out_bf - ref)))

    print("KERNEL_OK")
</pallas_src>

<mosaic_0001>
module attributes {stable_mosaic.version = 11 : i64} {
  func.func @_ffn_resident_kernel(%arg0: i32, %arg1: memref<8x128xf32, #tpu.memory_space<vmem>>, %arg2: memref<128x384xf32, #tpu.memory_space<vmem>>, %arg3: memref<1x384xf32, #tpu.memory_space<vmem>>, %arg4: memref<384x128xf32, #tpu.memory_space<vmem>>, %arg5: memref<1x128xf32, #tpu.memory_space<vmem>>, %arg6: memref<8x128xf32, #tpu.memory_space<vmem>>) attributes {dimension_semantics = [#tpu.dimension_semantics<parallel>], iteration_bounds = array<i64: 2>, scalar_prefetch = 0 : i64, scratch_operands = 0 : i64, tpu.core_type = #tpu.core_type<tc>, window_params = [{transform_indices = @transform_0, window_bounds = array<i64: 8, 128>}, {pipeline_mode = #tpu.pipeline_mode<synchronous>, transform_indices = @transform_1, window_bounds = array<i64: 128, 384>}, {pipeline_mode = #tpu.pipeline_mode<synchronous>, transform_indices = @transform_2, window_bounds = array<i64: 1, 384>}, {pipeline_mode = #tpu.pipeline_mode<synchronous>, transform_indices = @transform_3, window_bounds = array<i64: 384, 128>}, {pipeline_mode = #tpu.pipeline_mode<synchronous>, transform_indices = @transform_4, window_bounds = array<i64: 1, 128>}, {transform_indices = @transform_5, window_bounds = array<i64: 8, 128>}]} {
    %c0 = arith.constant 0 : index
    %c0_0 = arith.constant 0 : index
    %0 = vector.load %arg1[%c0, %c0_0] : memref<8x128xf32, #tpu.memory_space<vmem>>, vector<8x128xf32>
    %c0_1 = arith.constant 0 : index
    %c0_2 = arith.constant 0 : index
    %1 = vector.load %arg2[%c0_1, %c0_2] : memref<128x384xf32, #tpu.memory_space<vmem>>, vector<128x384xf32>
    %cst = arith.constant dense<0.000000e+00> : vector<8x384xf32>
    %2 = tpu.matmul %0, %1, %cst {dimension_numbers = #tpu.dot_dimension_numbers<[1], [0], [0], [1], [0, 0, 1, 1], [], []>} : vector<8x128xf32>, vector<128x384xf32>, vector<8x384xf32> -> vector<8x384xf32>
    %c0_3 = arith.constant 0 : index
    %c0_4 = arith.constant 0 : index
    %3 = vector.load %arg3[%c0_3, %c0_4] : memref<1x384xf32, #tpu.memory_space<vmem>>, vector<1x384xf32>
    %4 = vector.broadcast %3 : vector<1x384xf32> to vector<8x384xf32>
    %5 = arith.addf %2, %4 : vector<8x384xf32>
    %cst_5 = arith.constant 0.000000e+00 : f32
    %6 = vector.broadcast %cst_5 : f32 to vector<8x384xf32>
    %7 = arith.maximumf %5, %6 : vector<8x384xf32>
    %c0_6 = arith.constant 0 : index
    %c0_7 = arith.constant 0 : index
    %8 = vector.load %arg4[%c0_6, %c0_7] : memref<384x128xf32, #tpu.memory_space<vmem>>, vector<384x128xf32>
    %cst_8 = arith.constant dense<0.000000e+00> : vector<8x128xf32>
    %9 = tpu.matmul %7, %8, %cst_8 {dimension_numbers = #tpu.dot_dimension_numbers<[1], [0], [0], [1], [0, 0, 1, 1], [], []>} : vector<8x384xf32>, vector<384x128xf32>, vector<8x128xf32> -> vector<8x128xf32>
    %c0_9 = arith.constant 0 : index
    %c0_10 = arith.constant 0 : index
    %10 = vector.load %arg5[%c0_9, %c0_10] : memref<1x128xf32, #tpu.memory_space<vmem>>, vector<1x128xf32>
    %11 = vector.broadcast %10 : vector<1x128xf32> to vector<8x128xf32>
    %12 = arith.addf %9, %11 : vector<8x128xf32>
    %c0_11 = arith.constant 0 : index
    %c0_12 = arith.constant 0 : index
    %13 = vector.load %arg6[%c0_11, %c0_12] : memref<8x128xf32, #tpu.memory_space<vmem>>, vector<8x128xf32>
    tpu.vector_store %arg6[%c0_11, %c0_12], %12 {strides = array<i32>} : memref<8x128xf32, #tpu.memory_space<vmem>>, vector<8x128xf32>,
    return
  }
  func.func @transform_0(%arg0: i32) -> (i32, i32) {
    %c0_i32 = arith.constant 0 : i32
    %c0_i32_0 = arith.constant 0 : i32
    return %arg0, %c0_i32 : i32, i32
  }
  func.func @transform_1(%arg0: i32) -> (i32, i32) {
    %c0_i32 = arith.constant 0 : i32
    %c0_i32_0 = arith.constant 0 : i32
    %c0_i32_1 = arith.constant 0 : i32
    return %c0_i32, %c0_i32_0 : i32, i32
  }
  func.func @transform_2(%arg0: i32) -> (i32, i32) {
    %c0_i32 = arith.constant 0 : i32
    %c0_i32_0 = arith.constant 0 : i32
    %c0_i32_1 = arith.constant 0 : i32
    return %c0_i32, %c0_i32_0 : i32, i32
  }
  func.func @transform_3(%arg0: i32) -> (i32, i32) {
    %c0_i32 = arith.constant 0 : i32
    %c0_i32_0 = arith.constant 0 : i32
    %c0_i32_1 = arith.constant 0 : i32
    return %c0_i32, %c0_i32_0 : i32, i32
  }
  func.func @transform_4(%arg0: i32) -> (i32, i32) {
    %c0_i32 = arith.constant 0 : i32
    %c0_i32_0 = arith.constant 0 : i32
    %c0_i32_1 = arith.constant 0 : i32
    return %c0_i32, %c0_i32_0 : i32, i32
  }
  func.func @transform_5(%arg0: i32) -> (i32, i32) {
    %c0_i32 = arith.constant 0 : i32
    %c0_i32_0 = arith.constant 0 : i32
    return %arg0, %c0_i32 : i32, i32
  }
}

</mosaic_0001>

<llo_original>
// kernel: tpu_custom_call.1
$region0: #{tpu_custom_call.1}
  #allocation0 [shape = 'u32[]', space=smem, size = 0x4, offset = 0x4, fixed_abs, tag = 'smem constant byte address 0x4 - core index']
  #allocation1 [shape = 'u32[144,128]{1,0:T(1,128)}', space=vmem, size = 0x12000, scoped, tag = 'internal scratch']
  %s0 = inlined_call_operand.hbm [shape: f32[16,128], index: 0, kind: input, shape index: {}]
  %s1 = inlined_call_operand.hbm [shape: f32[128,384], index: 1, kind: input, shape index: {}]
  %s2 = inlined_call_operand.vmem [shape: f32[1,384], index: 2, kind: input, shape index: {}]
  %s3 = inlined_call_operand.hbm [shape: f32[384,128], index: 3, kind: input, shape index: {}]
  %s4 = inlined_call_operand.vmem [shape: f32[1,128], index: 4, kind: input, shape index: {}]
  %s5 = inlined_call_operand.hbm [shape: f32[16,128], index: 5, kind: output, shape index: {}]
  %s6 = sld [smem:[#allocation0]]
  $region65: #{tpu_custom_call.1} parent=0
    _
  %s8 = ssub.s32 1, %s6
  %s9 = scalar_select 0, %s8, %s6
  $region1: #{tpu_custom_call.1} parent=0
    #allocation2 [shape = 'u8[8192]{0}', space=vmem, size = 0x2000, scoped, tag = 'input window, operand 0']
    #allocation3 [shape = 's32[2]{0}', space=sflag, size = 0x8, scoped, tag = 'scoped memory for tpu_custom_call.1']
    #allocation4 [shape = 's32[2]{0}', space=sflag, size = 0x8, scoped, tag = 'scoped memory for tpu_custom_call.1']
    #allocation5 [shape = 'u8[196608]{0}', space=vmem, size = 0x30000, scoped, tag = 'input window, operand 1, single buffered']
    #allocation6 [shape = 's32[1]{0}', space=sflag, size = 0x4, scoped, tag = 'scoped memory for tpu_custom_call.1']
    #allocation7 [shape = 'u8[196608]{0}', space=vmem, size = 0x30000, scoped, tag = 'input window, operand 3, single buffered']
    #allocation8 [shape = 'u8[8192]{0}', space=vmem, size = 0x2000, scoped, tag = 'output window, operand 0']
    %10 = vsyncpa [#allocation3], 0
    %s11 = scalar_lea.sflag [#allocation3], 1
    %12 = vsyncpa %s11, 0
    %13 = vsyncpa [#allocation6], 0
    %14 = vsyncpa [#allocation4], 0
    %s15 = scalar_lea.sflag [#allocation4], 1
    %16 = vsyncpa %s15, 0
    loop: start=0, step=1, limit=4
    $region2: #{tpu_custom_call.1} parent=1 // loop_pre_header
      _
    $region3: #{tpu_custom_call.1} parent=1 // loop_header
      %s18 = sphi 0, %s22
      %p19 = scmp.ge.s32.totalorder %s18, 4
      %s28 = sphi 0, %s30
      %s31 = sphi 0, %s28
      %s32 = sphi 0, %s31
      %s48 = sphi 0, %s32
      %s52 = sphi 0, %s52
      %s54 = sphi 0, %s52
      %s55 = sphi 0, %s54
      %s69 = sphi 0, %s55
      %s73 = sphi 0, %s73
      %s75 = sphi 0, %s73
      %s76 = sphi 0, %s75
      %s90 = sphi 0, %s76
      %s94 = sphi 0, %s94
      %s96 = sphi 0, %s94
      %s97 = sphi 0, %s96
      %s111 = sphi 0, %s97
      %s115 = sphi 0, %s115
      %s117 = sphi 0, %s115
      %s118 = sphi 0, %s117
      %s132 = sphi 0, %s118
      %s138 = sphi 0, %s140
      %s141 = sphi 0, %s138
      %s142 = sphi 0, %s141
      %s158 = sphi 0, %s142
    $region4: #{tpu_custom_call.1} parent=1 // loop_header_branch
      %21 = sbr.rel (%p19) target = $region8
    $region5: #{tpu_custom_call.1} parent=1 // loop_body
      %s23 = ssub.s32 %s18, 1
      %s24 = ssub.s32 %s18, 2
      %s25 = sadd.s32 %s18, 1
      %s26 = ssub.s32 %s18, %s25
      %p27 = scmp.eq.s32.totalorder %s26, 0
      %s29 = sadd.s32 %s28, 1
      %s30 = scalar_select %p27, %s28, %s29
      %p33 = pneg %p27
      %p34 = scmp.eq.s32.totalorder %s18, 1
      %p35 = por %p33, %p34
      %p36 = scmp.ne.s32.totalorder %s28, %s31
      %p37 = scmp.eq.s32.totalorder %s18, 0
      %p38 = por %p36, %p37
      %p39 = scmp.ne.s32.totalorder %s28, %s31
      %p40 = scmp.eq.s32.totalorder %s23, 1
      %p41 = por %p39, %p40
      %p42 = scmp.ne.s32.totalorder %s31, %s32
      %p43 = scmp.eq.s32.totalorder %s23, 0
      %p44 = por %p42, %p43
      %p45 = scmp.ne.s32.totalorder %s31, %s32
      %p46 = scmp.eq.s32.totalorder %s24, 1
      %p47 = por %p45, %p46
      %p49 = scmp.ne.s32.totalorder %s32, %s48
      %p50 = scmp.eq.s32.totalorder %s24, 0
      %p51 = por %p49, %p50
      %s53 = sadd.s32 %s52, 1
      %p56 = scmp.eq.s32.totalorder %s18, 1
      %p57 = scmp.ne.s32.totalorder %s52, %s54
      %p58 = scmp.eq.s32.totalorder %s18, 0
      %p59 = por %p57, %p58
      %p60 = scmp.ne.s32.totalorder %s52, %s54
      %p61 = scmp.eq.s32.totalorder %s23, 1
      %p62 = por %p60, %p61
      %p63 = scmp.ne.s32.totalorder %s54, %s55
      %p64 = scmp.eq.s32.totalorder %s23, 0
      %p65 = por %p63, %p64
      %p66 = scmp.ne.s32.totalorder %s54, %s55
      %p67 = scmp.eq.s32.totalorder %s24, 1
      %p68 = por %p66, %p67
      %p70 = scmp.ne.s32.totalorder %s55, %s69
      %p71 = scmp.eq.s32.totalorder %s24, 0
      %p72 = por %p70, %p71
      %s74 = sadd.s32 %s73, 1
      %p77 = scmp.eq.s32.totalorder %s18, 1
      %p78 = scmp.ne.s32.totalorder %s73, %s75
      %p79 = scmp.eq.s32.totalorder %s18, 0
      %p80 = por %p78, %p79
      %p81 = scmp.ne.s32.totalorder %s73, %s75
      %p82 = scmp.eq.s32.totalorder %s23, 1
      %p83 = por %p81, %p82
      %p84 = scmp.ne.s32.totalorder %s75, %s76
      %p85 = scmp.eq.s32.totalorder %s23, 0
      %p86 = por %p84, %p85
      %p87 = scmp.ne.s32.totalorder %s75, %s76
      %p88 = scmp.eq.s32.totalorder %s24, 1
      %p89 = por %p87, %p88
      %p91 = scmp.ne.s32.totalorder %s76, %s90
      %p92 = scmp.eq.s32.totalorder %s24, 0
      %p93 = por %p91, %p92
      %s95 = sadd.s32 %s94, 1
      %p98 = scmp.eq.s32.totalorder %s18, 1
      %p99 = scmp.ne.s32.totalorder %s94, %s96
      %p100 = scmp.eq.s32.totalorder %s18, 0
      %p101 = por %p99, %p100
      %p102 = scmp.ne.s32.totalorder %s94, %s96
      %p103 = scmp.eq.s32.totalorder %s23, 1
      %p104 = por %p102, %p103
      %p105 = scmp.ne.s32.totalorder %s96, %s97
      %p106 = scmp.eq.s32.totalorder %s23, 0
      %p107 = por %p105, %p106
      %p108 = scmp.ne.s32.totalorder %s96, %s97
      %p109 = scmp.eq.s32.totalorder %s24, 1
      %p110 = por %p108, %p109
      %p112 = scmp.ne.s32.totalorder %s97, %s111
      %p113 = scmp.eq.s32.totalorder %s24, 0
      %p114 = por %p112, %p113
      %s116 = sadd.s32 %s115, 1
      %p119 = scmp.eq.s32.totalorder %s18, 1
      %p120 = scmp.ne.s32.totalorder %s115, %s117
      %p121 = scmp.eq.s32.totalorder %s18, 0
      %p122 = por %p120, %p121
      %p123 = scmp.ne.s32.totalorder %s115, %s117
      %p124 = scmp.eq.s32.totalorder %s23, 1
      %p125 = por %p123, %p124
      %p126 = scmp.ne.s32.totalorder %s117, %s118
      %p127 = scmp.eq.s32.totalorder %s23, 0
      %p128 = por %p126, %p127
      %p129 = scmp.ne.s32.totalorder %s117, %s118
      %p130 = scmp.eq.s32.totalorder %s24, 1
      %p131 = por %p129, %p130
      %p133 = scmp.ne.s32.totalorder %s118, %s132
      %p134 = scmp.eq.s32.totalorder %s24, 0
      %p135 = por %p133, %p134
      %s136 = ssub.s32 %s18, %s25
      %p137 = scmp.eq.s32.totalorder %s136, 0
      %s139 = sadd.s32 %s138, 1
      %s140 = scalar_select %p137, %s138, %s139
      %p143 = pneg %p137
      %p144 = scmp.eq.s32.totalorder %s18, 1
      %p145 = por %p143, %p144
      %p146 = scmp.ne.s32.totalorder %s138, %s141
      %p147 = scmp.eq.s32.totalorder %s18, 0
      %p148 = por %p146, %p147
      %p149 = scmp.ne.s32.totalorder %s138, %s141
      %p150 = scmp.eq.s32.totalorder %s23, 1
      %p151 = por %p149, %p150
      %p152 = scmp.ne.s32.totalorder %s141, %s142
      %p153 = scmp.eq.s32.totalorder %s23, 0
      %p154 = por %p152, %p153
      %p155 = scmp.ne.s32.totalorder %s141, %s142
      %p156 = scmp.eq.s32.totalorder %s24, 1
      %p157 = por %p155, %p156
      %p159 = scmp.ne.s32.totalorder %s142, %s158
      %p160 = scmp.eq.s32.totalorder %s24, 0
      %p161 = por %p159, %p160
      %p162 = scmp.le.s32.totalorder 1, %s18
      %p163 = scmp.lt.s32.totalorder %s18, 3
      %p164 = pnand %p162, %p163
      %p165 = pneg %p164
      // Predicated region
      $region9: #{tpu_custom_call.1} parent=5 // pred_check
        _
      $region10: #{tpu_custom_call.1} parent=5 // pred_check_branch
        %167 = sbr.rel (%p164) target = $region12
      $region11: #{tpu_custom_call.1} parent=5 // pred_region
        %s168 = ssub.s32 %s18, 1
        // Predicated region
        $region13: #{tpu_custom_call.1} parent=11 // pred_check
          %p169 = pneg %p65
        $region14: #{tpu_custom_call.1} parent=11 // pred_check_branch
          %171 = sbr.rel (%p169) target = $region16
        $region15: #{tpu_custom_call.1} parent=11 // pred_region
          %s173 = ssub.s32 6144, 6144
          %174 = vsyncadd [#allocation6], %s173
          %s175 = sshll.u32 [#allocation5], 4
          %s176 = int_to_ptr.vmem [resolvable:$true] %s175
          %181 = dma.hbm_to_vmem [thread:$0]  %s1, 6144, %s176, [#allocation6], 384, 384, 24
        $region16: #{tpu_custom_call.1} parent=11 // pred_fallthru
          _
        // Predicated region
        $region17: #{tpu_custom_call.1} parent=11 // pred_check
          %p182 = pneg %p86
        $region18: #{tpu_custom_call.1} parent=11 // pred_check_branch
          %184 = sbr.rel (%p182) target = $region20
        $region19: #{tpu_custom_call.1} parent=11 // pred_region
          _
        $region20: #{tpu_custom_call.1} parent=11 // pred_fallthru
          _
        // Predicated region
        $region21: #{tpu_custom_call.1} parent=11 // pred_check
          %p185 = pneg %p107
        $region22: #{tpu_custom_call.1} parent=11 // pred_check_branch
          %187 = sbr.rel (%p185) target = $region24
        $region23: #{tpu_custom_call.1} parent=11 // pred_region
          %s189 = ssub.s32 6144, 6144
          %190 = vsyncadd [#allocation6], %s189
          %s191 = sshll.u32 [#allocation7], 4
          %s192 = int_to_ptr.vmem [resolvable:$true] %s191
          %197 = dma.hbm_to_vmem [thread:$0]  %s3, 6144, %s192, [#allocation6], 128, 128, 8
        $region24: #{tpu_custom_call.1} parent=11 // pred_fallthru
          _
        // Predicated region
        $region25: #{tpu_custom_call.1} parent=11 // pred_check
          %p198 = pneg %p128
        $region26: #{tpu_custom_call.1} parent=11 // pred_check_branch
          %200 = sbr.rel (%p198) target = $region28
        $region27: #{tpu_custom_call.1} parent=11 // pred_region
          _
        $region28: #{tpu_custom_call.1} parent=11 // pred_fallthru
          _
      $region12: #{tpu_custom_call.1} parent=5 // pred_fallthru
        _
      %p201 = scmp.lt.s32.totalorder %s18, 2
      // Predicated region
      $region29: #{tpu_custom_call.1} parent=5 // pred_check
        %p202 = pneg %p201
      $region30: #{tpu_custom_call.1} parent=5 // pred_check_branch
        %204 = sbr.rel (%p202) target = $region32
      $region31: #{tpu_custom_call.1} parent=5 // pred_region
        // Predicated region
        $region33: #{tpu_custom_call.1} parent=31 // pred_check
          %p205 = pneg %p38
        $region34: #{tpu_custom_call.1} parent=31 // pred_check_branch
          %207 = sbr.rel (%p205) target = $region36
        $region35: #{tpu_custom_call.1} parent=31 // pred_region
          %s208 = sand.u32 %s28, 1
          %s209 = scalar_lea.sflag [#allocation3], %s208
          %s210 = sand.u32 %s28, 1
          %s211 = smul.addr %s210, 8
          %s212 = scalar_lea.vmem [#allocation2], %s211
          %s214 = ssub.s32 128, 128
          %215 = vsyncadd %s209, %s214
          %s216 = smul.addr %s18, 128
          %s217 = scalar_lea.hbm %s0, %s216
          %s219 = sshll.u32 %s212, 4
          %s220 = int_to_ptr.vmem [resolvable:$true] %s219
          %222 = dma.hbm_to_vmem [thread:$0]  %s217, 128, %s220, %s209
        $region36: #{tpu_custom_call.1} parent=31 // pred_fallthru
          _
      $region32: #{tpu_custom_call.1} parent=5 // pred_fallthru
        _
      %p223 = scmp.le.s32.totalorder 1, %s18
      %p224 = scmp.lt.s32.totalorder %s18, 3
      %p225 = pnand %p223, %p224
      %p226 = pneg %p225
      // Predicated region
      $region37: #{tpu_custom_call.1} parent=5 // pred_check
        _
      $region38: #{tpu_custom_call.1} parent=5 // pred_check_branch
        %228 = sbr.rel (%p225) target = $region40
      $region39: #{tpu_custom_call.1} parent=5 // pred_region
        %s229 = ssub.s32 %s18, 1
        %s230 = sand.u32 %s31, 1
        %s231 = scalar_lea.sflag [#allocation3], %s230
        %s232 = sand.u32 %s31, 1
        %s233 = smul.addr %s232, 8
        %s234 = scalar_lea.vmem [#allocation2], %s233
        // Predicated region
        $region41: #{tpu_custom_call.1} parent=39 // pred_check
          %p235 = pneg %p44
        $region42: #{tpu_custom_call.1} parent=39 // pred_check_branch
          %237 = sbr.rel (%p235) target = $region44
        $region43: #{tpu_custom_call.1} parent=39 // pred_region
          %238 = dma.done %s231, 128
        $region44: #{tpu_custom_call.1} parent=39 // pred_fallthru
          _
        // Predicated region
        $region45: #{tpu_custom_call.1} parent=39 // pred_check
          %p239 = pneg %p65
        $region46: #{tpu_custom_call.1} parent=39 // pred_check_branch
          %241 = sbr.rel (%p239) target = $region48
        $region47: #{tpu_custom_call.1} parent=39 // pred_region
          %242 = dma.done [#allocation6], 6144
        $region48: #{tpu_custom_call.1} parent=39 // pred_fallthru
          _
        // Predicated region
        $region49: #{tpu_custom_call.1} parent=39 // pred_check
          %p243 = pneg %p107
        $region50: #{tpu_custom_call.1} parent=39 // pred_check_branch
          %245 = sbr.rel (%p243) target = $region52
        $region51: #{tpu_custom_call.1} parent=39 // pred_region
          %246 = dma.done [#allocation6], 6144
        $region52: #{tpu_custom_call.1} parent=39 // pred_fallthru
          _
        %s247 = sand.u32 %s31, 1
        %s248 = scalar_lea.sflag [#allocation3], %s247
        %s249 = sand.u32 %s31, 1
        %s250 = smul.addr %s249, 8
        %s251 = scalar_lea.vmem [#allocation2], %s250
        %p252 = pneg %p44
        %p253 = pneg %p41
        %p254 = pneg %p65
        %p255 = pneg %p62
        %p256 = pneg %p86
        %p257 = pneg %p83
        %p258 = pneg %p107
        %p259 = pneg %p104
        %p260 = pneg %p128
        %p261 = pneg %p125
        %p262 = pneg %p154
        %p263 = pneg %p151
        %s264 = sand.u32 %s141, 1
        %s265 = scalar_lea.sflag [#allocation4], %s264
        %s266 = sand.u32 %s141, 1
        %s267 = smul.addr %s266, 8
        %s268 = scalar_lea.vmem [#allocation8], %s267
        %v269 = vld [vmem:[%s234] sm:$0xff]
        %v270 = vld [vmem:[#allocation5] sm:$0xff]
        %v271 = vld [vmem:[#allocation5 + $0x8] sm:$0xff]
        %v272 = vld [vmem:[#allocation5 + $0x10] sm:$0xff]
        %v273 = vld [vmem:[#allocation5 + $0x18] sm:$0xff]
        %v274 = vld [vmem:[#allocation5 + $0x20] sm:$0xff]
        %v275 = vld [vmem:[#allocation5 + $0x28] sm:$0xff]
        %v276 = vld [vmem:[#allocation5 + $0x30] sm:$0xff]
        %v277 = vld [vmem:[#allocation5 + $0x38] sm:$0xff]
        %v278 = vld [vmem:[#allocation5 + $0x40] sm:$0xff]
        %v279 = vld [vmem:[#allocation5 + $0x48] sm:$0xff]
        %v280 = vld [vmem:[#allocation5 + $0x50] sm:$0xff]
        %v281 = vld [vmem:[#allocation5 + $0x58] sm:$0xff]
        %v282 = vld [vmem:[#allocation5 + $0x60] sm:$0xff]
        %v283 = vld [vmem:[#allocation5 + $0x68] sm:$0xff]
        %v284 = vld [vmem:[#allocation5 + $0x70] sm:$0xff]
        %v285 = vld [vmem:[#allocation5 + $0x78] sm:$0xff]
        %v286 = vld [vmem:[#allocation5 + $0x80] sm:$0xff]
        %v287 = vld [vmem:[#allocation5 + $0x88] sm:$0xff]
        %v288 = vld [vmem:[#allocation5 + $0x90] sm:$0xff]
        %v289 = vld [vmem:[#allocation5 + $0x98] sm:$0xff]
        %v290 = vld [vmem:[#allocation5 + $0xa0] sm:$0xff]
        %v291 = vld [vmem:[#allocation5 + $0xa8] sm:$0xff]
        %v292 = vld [vmem:[#allocation5 + $0xb0] sm:$0xff]
        %v293 = vld [vmem:[#allocation5 + $0xb8] sm:$0xff]
        %v294 = vld [vmem:[#allocation5 + $0xc0] sm:$0xff]
        %v295 = vld [vmem:[#allocation5 + $0xc8] sm:$0xff]
        %v296 = vld [vmem:[#allocation5 + $0xd0] sm:$0xff]
        %v297 = vld [vmem:[#allocation5 + $0xd8] sm:$0xff]
        %v298 = vld [vmem:[#allocation5 + $0xe0] sm:$0xff]
        %v299 = vld [vmem:[#allocation5 + $0xe8] sm:$0xff]
        %v300 = vld [vmem:[#allocation5 + $0xf0] sm:$0xff]
        %v301 = vld [vmem:[#allocation5 + $0xf8] sm:$0xff]
        %v302 = vld [vmem:[#allocation5 + $0x100] sm:$0xff]
        %v303 = vld [vmem:[#allocation5 + $0x108] sm:$0xff]
        %v304 = vld [vmem:[#allocation5 + $0x110] sm:$0xff]
        %v305 = vld [vmem:[#allocation5 + $0x118] sm:$0xff]
        %v306 = vld [vmem:[#allocation5 + $0x120] sm:$0xff]
        %v307 = vld [vmem:[#allocation5 + $0x128] sm:$0xff]
        %v308 = vld [vmem:[#allocation5 + $0x130] sm:$0xff]
        %v309 = vld [vmem:[#allocation5 + $0x138] sm:$0xff]
        %v310 = vld [vmem:[#allocation5 + $0x140] sm:$0xff]
        %v311 = vld [vmem:[#allocation5 + $0x148] sm:$0xff]
        %v312 = vld [vmem:[#allocation5 + $0x150] sm:$0xff]
        %v313 = vld [vmem:[#allocation5 + $0x158] sm:$0xff]
        %v314 = vld [vmem:[#allocation5 + $0x160] sm:$0xff]
        %v315 = vld [vmem:[#allocation5 + $0x168] sm:$0xff]
        %v316 = vld [vmem:[#allocation5 + $0x170] sm:$0xff]
        %v317 = vld [vmem:[#allocation5 + $0x178] sm:$0xff]
        %v318 = vld [vmem:[%s2] sm:$0x7]
        %v320 = vlaneseq
        %v321 = vshrl.u32 %v320, 7
        %v322 = vsub.s32 0, %v321
        %v323 = vrot.slane %v318, %v322
        %v324 = vlaneseq
        %v325 = vshrl.u32 %v324, 7
        %v326 = vsub.s32 1, %v325
        %v327 = vrot.slane %v318, %v326
        %v328 = vlaneseq
        %v329 = vshrl.u32 %v328, 7
        %v330 = vsub.s32 2, %v329
        %v331 = vrot.slane %v318, %v330
        %335 = vmatprep.subr.mxu0 %v271
        %336 = vmatpush1.msra.mxu0 %v270
        %337 = vmatprep.subr.mxu0 %v274
        %338 = vmatpush1.msra.mxu0 %v273
        %339 = vmatprep.subr.mxu0 %v277
        %340 = vmatpush1.msra.mxu0 %v276
        %341 = vmatprep.subr.mxu0 %v280
        %342 = vmatpush1.msra.mxu0 %v279
        %343 = vmatprep.subr.mxu0 %v283
        %344 = vmatpush1.msra.mxu0 %v282
        %345 = vmatprep.subr.mxu0 %v286
        %346 = vmatpush1.msra.mxu0 %v285
        %347 = vmatprep.subr.mxu0 %v289
        %348 = vmatpush1.msra.mxu0 %v288
        %349 = vmatprep.subr.mxu0 %v292
        %350 = vmatpush1.msra.mxu0 %v291
        %351 = vmatprep.subr.mxu0 %v295
        %352 = vmatpush1.msra.mxu0 %v294
        %353 = vmatprep.subr.mxu0 %v298
        %354 = vmatpush1.msra.mxu0 %v297
        %355 = vmatprep.subr.mxu0 %v301
        %356 = vmatpush1.msra.mxu0 %v300
        %357 = vmatprep.subr.mxu0 %v304
        %358 = vmatpush1.msra.mxu0 %v303
        %359 = vmatprep.subr.mxu0 %v307
        %360 = vmatpush1.msra.mxu0 %v306
        %361 = vmatprep.subr.mxu0 %v310
        %362 = vmatpush1.msra.mxu0 %v309
        %363 = vmatprep.subr.mxu0 %v313
        %364 = vmatpush1.msra.mxu0 %v312
        %365 = vmatprep.subr.mxu0 %v316
        %366 = vmatpush1.msra.mxu0 %v315
        %367 = vmatprep.subr.mxu0 0.0
        %368 = vmatpush1.msra.mxu0 0.0
        %369 = vmatprep.subr.mxu0 0.0
        %370 = vmatpush1.msra.mxu0 0.0
        %371 = vmatprep.subr.mxu0 0.0
        %372 = vmatpush1.msra.mxu0 0.0
        %373 = vmatprep.subr.mxu0 0.0
        %374 = vmatpush1.msra.mxu0 0.0
        %375 = vmatprep.subr.mxu0 0.0
        %376 = vmatpush1.msra.mxu0 0.0
        %377 = vmatprep.subr.mxu0 0.0
        %378 = vmatpush1.msra.mxu0 0.0
        %379 = vmatprep.subr.mxu0 0.0
        %380 = vmatpush1.msra.mxu0 0.0
        %381 = vmatprep.subr.mxu0 0.0
        %382 = vmatpush1.msra.mxu0 0.0
        %383 = vmatprep.subr.mxu0 0.0
        %384 = vmatpush1.msra.mxu0 0.0
        %385 = vmatprep.subr.mxu0 0.0
        %386 = vmatpush1.msra.mxu0 0.0
        %387 = vmatprep.subr.mxu0 0.0
        %388 = vmatpush1.msra.mxu0 0.0
        %389 = vmatprep.subr.mxu0 0.0
        %390 = vmatpush1.msra.mxu0 0.0
        %391 = vmatprep.subr.mxu0 0.0
        %392 = vmatpush1.msra.mxu0 0.0
        %393 = vmatprep.subr.mxu0 0.0
        %394 = vmatpush1.msra.mxu0 0.0
        %395 = vmatprep.subr.mxu0 0.0
        %396 = vmatpush1.msra.mxu0 0.0
        %397 = vmatprep.subr.mxu0 0.0
        %398 = vmatpush1.msra.mxu0 0.0
        %399 = vmatprep.mubr.f32.mxu0 0.0
        %400 = vmatmul.mubr.f32.gmra.mrb[0].mxu0 %v269
        %v401 = vpop.f32.mrb[0].mxu0
        %v402 = vadd.f32 %v323, %v401
        %v403 = vpop.f32.mrb[0].mxu0
        %v404 = vadd.f32 %v327, %v403
        %405 = vdwg.mxu0
        %406 = vmatprep.subr.mxu0 0.0
        %407 = vmatpush1.msra.mxu0 %v272
        %408 = vmatprep.subr.mxu0 0.0
        %409 = vmatpush1.msra.mxu0 %v275
        %410 = vmatprep.subr.mxu0 0.0
        %411 = vmatpush1.msra.mxu0 %v278
        %412 = vmatprep.subr.mxu0 0.0
        %413 = vmatpush1.msra.mxu0 %v281
        %414 = vmatprep.subr.mxu0 0.0
        %415 = vmatpush1.msra.mxu0 %v284
        %416 = vmatprep.subr.mxu0 0.0
        %417 = vmatpush1.msra.mxu0 %v287
        %418 = vmatprep.subr.mxu0 0.0
        %419 = vmatpush1.msra.mxu0 %v290
        %420 = vmatprep.subr.mxu0 0.0
        %421 = vmatpush1.msra.mxu0 %v293
        %422 = vmatprep.subr.mxu0 0.0
        %423 = vmatpush1.msra.mxu0 %v296
        %424 = vmatprep.subr.mxu0 0.0
        %425 = vmatpush1.msra.mxu0 %v299
        %426 = vmatprep.subr.mxu0 0.0
        %427 = vmatpush1.msra.mxu0 %v302
        %428 = vmatprep.subr.mxu0 0.0
        %429 = vmatpush1.msra.mxu0 %v305
        %430 = vmatprep.subr.mxu0 0.0
        %431 = vmatpush1.msra.mxu0 %v308
        %432 = vmatprep.subr.mxu0 0.0
        %433 = vmatpush1.msra.mxu0 %v311
        %434 = vmatprep.subr.mxu0 0.0
        %435 = vmatpush1.msra.mxu0 %v314
        %436 = vmatprep.subr.mxu0 0.0
        %437 = vmatpush1.msra.mxu0 %v317
        %438 = vmatprep.subr.mxu0 0.0
        %439 = vmatpush1.msra.mxu0 0.0
        %440 = vmatprep.subr.mxu0 0.0
        %441 = vmatpush1.msra.mxu0 0.0
        %442 = vmatprep.subr.mxu0 0.0
        %443 = vmatpush1.msra.mxu0 0.0
        %444 = vmatprep.subr.mxu0 0.0
        %445 = vmatpush1.msra.mxu0 0.0
        %446 = vmatprep.subr.mxu0 0.0
        %447 = vmatpush1.msra.mxu0 0.0
        %448 = vmatprep.subr.mxu0 0.0
        %449 = vmatpush1.msra.mxu0 0.0
        %450 = vmatprep.subr.mxu0 0.0
        %451 = vmatpush1.msra.mxu0 0.0
        %452 = vmatprep.subr.mxu0 0.0
        %453 = vmatpush1.msra.mxu0 0.0
        %454 = vmatprep.subr.mxu0 0.0
        %455 = vmatpush1.msra.mxu0 0.0
        %456 = vmatprep.subr.mxu0 0.0
        %457 = vmatpush1.msra.mxu0 0.0
        %458 = vmatprep.subr.mxu0 0.0
        %459 = vmatpush1.msra.mxu0 0.0
        %460 = vmatprep.subr.mxu0 0.0
        %461 = vmatpush1.msra.mxu0 0.0
        %462 = vmatprep.subr.mxu0 0.0
        %463 = vmatpush1.msra.mxu0 0.0
        %464 = vmatprep.subr.mxu0 0.0
        %465 = vmatpush1.msra.mxu0 0.0
        %466 = vmatprep.subr.mxu0 0.0
        %467 = vmatpush1.msra.mxu0 0.0
        %468 = vmatprep.subr.mxu0 0.0
        %469 = vmatpush1.msra.mxu0 0.0
        %470 = vmatprep.mubr.f32.mxu0 0.0
        %471 = vmatmul.mubr.f32.gmra.mrb[0].mxu0 %v269
        %v472 = vpop.f32.mrb[0].mxu0
        %v473 = vadd.f32 %v331, %v472
        %v474 = vpop.f32.mrb[0].mxu0
        %475 = vdwg.mxu0
        %v476 = vmax.f32 %v402, 0.0
        %v477 = vmax.f32 %v404, 0.0
        %v478 = vmax.f32 %v473, 0.0
        %v479 = vld [vmem:[#allocation7] sm:$0xff]
        %v480 = vld [vmem:[#allocation7 + $0x8] sm:$0xff]
        %v481 = vld [vmem:[#allocation7 + $0x10] sm:$0xff]
        %v482 = vld [vmem:[#allocation7 + $0x18] sm:$0xff]
        %v483 = vld [vmem:[#allocation7 + $0x20] sm:$0xff]
        %v484 = vld [vmem:[#allocation7 + $0x28] sm:$0xff]
        %v485 = vld [vmem:[#allocation7 + $0x30] sm:$0xff]
        %v486 = vld [vmem:[#allocation7 + $0x38] sm:$0xff]
        %v487 = vld [vmem:[#allocation7 + $0x40] sm:$0xff]
        %v488 = vld [vmem:[#allocation7 + $0x48] sm:$0xff]
        %v489 = vld [vmem:[#allocation7 + $0x50] sm:$0xff]
        %v490 = vld [vmem:[#allocation7 + $0x58] sm:$0xff]
        %v491 = vld [vmem:[#allocation7 + $0x60] sm:$0xff]
        %v492 = vld [vmem:[#allocation7 + $0x68] sm:$0xff]
        %v493 = vld [vmem:[#allocation7 + $0x70] sm:$0xff]
        %v494 = vld [vmem:[#allocation7 + $0x78] sm:$0xff]
        %v495 = vld [vmem:[#allocation7 + $0x80] sm:$0xff]
        %v496 = vld [vmem:[#allocation7 + $0x88] sm:$0xff]
        %v497 = vld [vmem:[#allocation7 + $0x90] sm:$0xff]
        %v498 = vld [vmem:[#allocation7 + $0x98] sm:$0xff]
        %v499 = vld [vmem:[#allocation7 + $0xa0] sm:$0xff]
        %v500 = vld [vmem:[#allocation7 + $0xa8] sm:$0xff]
        %v501 = vld [vmem:[#allocation7 + $0xb0] sm:$0xff]
        %v502 = vld [vmem:[#allocation7 + $0xb8] sm:$0xff]
        %v503 = vld [vmem:[#allocation7 + $0xc0] sm:$0xff]
        %v504 = vld [vmem:[#allocation7 + $0xc8] sm:$0xff]
        %v505 = vld [vmem:[#allocation7 + $0xd0] sm:$0xff]
        %v506 = vld [vmem:[#allocation7 + $0xd8] sm:$0xff]
        %v507 = vld [vmem:[#allocation7 + $0xe0] sm:$0xff]
        %v508 = vld [vmem:[#allocation7 + $0xe8] sm:$0xff]
        %v509 = vld [vmem:[#allocation7 + $0xf0] sm:$0xff]
        %v510 = vld [vmem:[#allocation7 + $0xf8] sm:$0xff]
        %v511 = vld [vmem:[#allocation7 + $0x100] sm:$0xff]
        %v512 = vld [vmem:[#allocation7 + $0x108] sm:$0xff]
        %v513 = vld [vmem:[#allocation7 + $0x110] sm:$0xff]
        %v514 = vld [vmem:[#allocation7 + $0x118] sm:$0xff]
        %v515 = vld [vmem:[#allocation7 + $0x120] sm:$0xff]
        %v516 = vld [vmem:[#allocation7 + $0x128] sm:$0xff]
        %v517 = vld [vmem:[#allocation7 + $0x130] sm:$0xff]
        %v518 = vld [vmem:[#allocation7 + $0x138] sm:$0xff]
        %v519 = vld [vmem:[#allocation7 + $0x140] sm:$0xff]
        %v520 = vld [vmem:[#allocation7 + $0x148] sm:$0xff]
        %v521 = vld [vmem:[#allocation7 + $0x150] sm:$0xff]
        %v522 = vld [vmem:[#allocation7 + $0x158] sm:$0xff]
        %v523 = vld [vmem:[#allocation7 + $0x160] sm:$0xff]
        %v524 = vld [vmem:[#allocation7 + $0x168] sm:$0xff]
        %v525 = vld [vmem:[#allocation7 + $0x170] sm:$0xff]
        %v526 = vld [vmem:[#allocation7 + $0x178] sm:$0xff]
        %v527 = vld [vmem:[%s4] sm:$0x1]
        %v529 = vlaneseq
        %v530 = vshrl.u32 %v529, 7
        %v531 = vsub.s32 0, %v530
        %v532 = vrot.slane %v527, %v531
        %534 = vmatprep.subr.mxu0 0.0
        %535 = vmatpush1.msra.mxu0 %v479
        %536 = vmatprep.subr.mxu0 0.0
        %537 = vmatpush1.msra.mxu0 %v480
        %538 = vmatprep.subr.mxu0 0.0
        %539 = vmatpush1.msra.mxu0 %v481
        %540 = vmatprep.subr.mxu0 0.0
        %541 = vmatpush1.msra.mxu0 %v482
        %542 = vmatprep.subr.mxu0 0.0
        %543 = vmatpush1.msra.mxu0 %v483
        %544 = vmatprep.subr.mxu0 0.0
        %545 = vmatpush1.msra.mxu0 %v484
        %546 = vmatprep.subr.mxu0 0.0
        %547 = vmatpush1.msra.mxu0 %v485
        %548 = vmatprep.subr.mxu0 0.0
        %549 = vmatpush1.msra.mxu0 %v486
        %550 = vmatprep.subr.mxu0 0.0
        %551 = vmatpush1.msra.mxu0 %v487
        %552 = vmatprep.subr.mxu0 0.0
        %553 = vmatpush1.msra.mxu0 %v488
        %554 = vmatprep.subr.mxu0 0.0
        %555 = vmatpush1.msra.mxu0 %v489
        %556 = vmatprep.subr.mxu0 0.0
        %557 = vmatpush1.msra.mxu0 %v490
        %558 = vmatprep.subr.mxu0 0.0
        %559 = vmatpush1.msra.mxu0 %v491
        %560 = vmatprep.subr.mxu0 0.0
        %561 = vmatpush1.msra.mxu0 %v492
        %562 = vmatprep.subr.mxu0 0.0
        %563 = vmatpush1.msra.mxu0 %v493
        %564 = vmatprep.subr.mxu0 0.0
        %565 = vmatpush1.msra.mxu0 %v494
        %566 = vmatprep.subr.mxu0 0.0
        %567 = vmatpush1.msra.mxu0 %v495
        %568 = vmatprep.subr.mxu0 0.0
        %569 = vmatpush1.msra.mxu0 %v496
        %570 = vmatprep.subr.mxu0 0.0
        %571 = vmatpush1.msra.mxu0 %v497
        %572 = vmatprep.subr.mxu0 0.0
        %573 = vmatpush1.msra.mxu0 %v498
        %574 = vmatprep.subr.mxu0 0.0
        %575 = vmatpush1.msra.mxu0 %v499
        %576 = vmatprep.subr.mxu0 0.0
        %577 = vmatpush1.msra.mxu0 %v500
        %578 = vmatprep.subr.mxu0 0.0
        %579 = vmatpush1.msra.mxu0 %v501
        %580 = vmatprep.subr.mxu0 0.0
        %581 = vmatpush1.msra.mxu0 %v502
        %582 = vmatprep.subr.mxu0 0.0
        %583 = vmatpush1.msra.mxu0 %v503
        %584 = vmatprep.subr.mxu0 0.0
        %585 = vmatpush1.msra.mxu0 %v504
        %586 = vmatprep.subr.mxu0 0.0
        %587 = vmatpush1.msra.mxu0 %v505
        %588 = vmatprep.subr.mxu0 0.0
        %589 = vmatpush1.msra.mxu0 %v506
        %590 = vmatprep.subr.mxu0 0.0
        %591 = vmatpush1.msra.mxu0 %v507
        %592 = vmatprep.subr.mxu0 0.0
        %593 = vmatpush1.msra.mxu0 %v508
        %594 = vmatprep.subr.mxu0 0.0
        %595 = vmatpush1.msra.mxu0 %v509
        %596 = vmatprep.subr.mxu0 0.0
        %597 = vmatpush1.msra.mxu0 %v510
        %598 = vmatprep.mubr.f32.mxu0 %v477
        %599 = vmatmul.mubr.f32.gmra.mrb[0].mxu0 %v476
        %v600 = vpop.f32.mrb[0].mxu0
        %v601 = vadd.f32 %v532, %v600
        %v602 = vpop.f32.mrb[0].mxu0
        %603 = vdwg.mxu0
        %604 = vmatprep.subr.mxu0 0.0
        %605 = vmatpush1.msra.mxu0 %v511
        %606 = vmatprep.subr.mxu0 0.0
        %607 = vmatpush1.msra.mxu0 %v512
        %608 = vmatprep.subr.mxu0 0.0
        %609 = vmatpush1.msra.mxu0 %v513
        %610 = vmatprep.subr.mxu0 0.0
        %611 = vmatpush1.msra.mxu0 %v514
        %612 = vmatprep.subr.mxu0 0.0
        %613 = vmatpush1.msra.mxu0 %v515
        %614 = vmatprep.subr.mxu0 0.0
        %615 = vmatpush1.msra.mxu0 %v516
        %616 = vmatprep.subr.mxu0 0.0
        %617 = vmatpush1.msra.mxu0 %v517
        %618 = vmatprep.subr.mxu0 0.0
        %619 = vmatpush1.msra.mxu0 %v518
        %620 = vmatprep.subr.mxu0 0.0
        %621 = vmatpush1.msra.mxu0 %v519
        %622 = vmatprep.subr.mxu0 0.0
        %623 = vmatpush1.msra.mxu0 %v520
        %624 = vmatprep.subr.mxu0 0.0
        %625 = vmatpush1.msra.mxu0 %v521
        %626 = vmatprep.subr.mxu0 0.0
        %627 = vmatpush1.msra.mxu0 %v522
        %628 = vmatprep.subr.mxu0 0.0
        %629 = vmatpush1.msra.mxu0 %v523
        %630 = vmatprep.subr.mxu0 0.0
        %631 = vmatpush1.msra.mxu0 %v524
        %632 = vmatprep.subr.mxu0 0.0
        %633 = vmatpush1.msra.mxu0 %v525
        %634 = vmatprep.subr.mxu0 0.0
        %635 = vmatpush1.msra.mxu0 %v526
        %636 = vmatprep.subr.mxu0 0.0
        %637 = vmatpush1.msra.mxu0 0.0
        %638 = vmatprep.subr.mxu0 0.0
        %639 = vmatpush1.msra.mxu0 0.0
        %640 = vmatprep.subr.mxu0 0.0
        %641 = vmatpush1.msra.mxu0 0.0
        %642 = vmatprep.subr.mxu0 0.0
        %643 = vmatpush1.msra.mxu0 0.0
        %644 = vmatprep.subr.mxu0 0.0
        %645 = vmatpush1.msra.mxu0 0.0
        %646 = vmatprep.subr.mxu0 0.0
        %647 = vmatpush1.msra.mxu0 0.0
        %648 = vmatprep.subr.mxu0 0.0
        %649 = vmatpush1.msra.mxu0 0.0
        %650 = vmatprep.subr.mxu0 0.0
        %651 = vmatpush1.msra.mxu0 0.0
        %652 = vmatprep.subr.mxu0 0.0
        %653 = vmatpush1.msra.mxu0 0.0
        %654 = vmatprep.subr.mxu0 0.0
        %655 = vmatpush1.msra.mxu0 0.0
        %656 = vmatprep.subr.mxu0 0.0
        %657 = vmatpush1.msra.mxu0 0.0
        %658 = vmatprep.subr.mxu0 0.0
        %659 = vmatpush1.msra.mxu0 0.0
        %660 = vmatprep.subr.mxu0 0.0
        %661 = vmatpush1.msra.mxu0 0.0
        %662 = vmatprep.subr.mxu0 0.0
        %663 = vmatpush1.msra.mxu0 0.0
        %664 = vmatprep.subr.mxu0 0.0
        %665 = vmatpush1.msra.mxu0 0.0
        %666 = vmatprep.subr.mxu0 0.0
        %667 = vmatpush1.msra.mxu0 0.0
        %668 = vmatprep.mubr.f32.mxu0 0.0
        %669 = vmatmul.mubr.f32.gmra.mrb[0].mxu0 %v478
        %v670 = vpop.f32.mrb[0].mxu0
        %v671 = vadd.f32 %v601, %v670
        %v672 = vpop.f32.mrb[0].mxu0
        %673 = vdwg.mxu0
        %674 = vst [vmem:[%s268] sm:$0xff] %v671
        %s675 = sand.u32 %s141, 1
        %s676 = scalar_lea.sflag [#allocation4], %s675
        %s677 = sand.u32 %s141, 1
        %s678 = smul.addr %s677, 8
        %s679 = scalar_lea.vmem [#allocation8], %s678
        // Predicated region
        $region53: #{tpu_custom_call.1} parent=39 // pred_check
          %p680 = pneg %p151
        $region54: #{tpu_custom_call.1} parent=39 // pred_check_branch
          %682 = sbr.rel (%p680) target = $region56
        $region55: #{tpu_custom_call.1} parent=39 // pred_region
          %s684 = ssub.s32 128, 128
          %685 = vsyncadd %s676, %s684
          %s686 = smul.addr %s23, 128
          %s687 = scalar_lea.hbm %s5, %s686
          %s689 = sshll.u32 %s679, 4
          %s690 = int_to_ptr.vmem [resolvable:$true] %s689
          %692 = dma.vmem_to_hbm [thread:$0]  %s690, 128, %s687, %s676
        $region56: #{tpu_custom_call.1} parent=39 // pred_fallthru
          _
      $region40: #{tpu_custom_call.1} parent=5 // pred_fallthru
        _
      %p693 = scmp.le.s32.totalorder 2, %s18
      // Predicated region
      $region57: #{tpu_custom_call.1} parent=5 // pred_check
        %p694 = pneg %p693
      $region58: #{tpu_custom_call.1} parent=5 // pred_check_branch
        %696 = sbr.rel (%p694) target = $region60
      $region59: #{tpu_custom_call.1} parent=5 // pred_region
        %s697 = ssub.s32 %s18, 2
        // Predicated region
        $region61: #{tpu_custom_call.1} parent=59 // pred_check
          %p698 = pneg %p157
        $region62: #{tpu_custom_call.1} parent=59 // pred_check_branch
          %700 = sbr.rel (%p698) target = $region64
        $region63: #{tpu_custom_call.1} parent=59 // pred_region
          %s701 = sand.u32 %s142, 1
          %s702 = scalar_lea.sflag [#allocation4], %s701
          %s703 = sand.u32 %s142, 1
          %s704 = smul.addr %s703, 8
          %s705 = scalar_lea.vmem [#allocation8], %s704
          %706 = dma.done %s702, 128
        $region64: #{tpu_custom_call.1} parent=59 // pred_fallthru
          _
      $region60: #{tpu_custom_call.1} parent=5 // pred_fallthru
        _
    $region6: #{tpu_custom_call.1} parent=1 // loop_footer
      %s22 = sadd.s32 1, %s18
    $region7: #{tpu_custom_call.1} parent=1 // loop_footer_branch
      %17 = sbr.rel target = $region3
    $region8: #{tpu_custom_call.1} parent=1 // loop_exit
      _
    %707 = vsyncpa [#allocation3], 1
    %s708 = scalar_lea.sflag [#allocation3], 1
    %709 = vsyncpa %s708, 1
    %710 = vsyncpa [#allocation6], 1
    %711 = vsyncpa [#allocation4], 1
    %s712 = scalar_lea.sflag [#allocation4], 1
    %713 = vsyncpa %s712, 1

</llo_original>
